<compile_context>
chip_gen: v7x
topology: tpu7x:2x2x1
jax: 0.10.0
libtpu: 0.0.40
codegen_flags: <defaults>
</compile_context>

<pallas_src>
import functools

import numpy as np
import jax
import jax.numpy as jnp
from jax.experimental import pallas as pl
from jax.experimental.pallas import tpu as pltpu


def _round_up(v, m):
    return -(-v // m) * m


def _wfc_kernel(x_ref, mask_ref, cx_ref, cy_ref, out_ref, *,
                count, C, W, P, softmax, slab_dtype):
    """One grid step = TB batch elements.

    x_ref:    (TB, C, P)  activations, flattened spatial dim (p = y*W + x), VMEM
    mask_ref: (2, P)      row 0: horizontal-pair validity, row 1: vertical, VMEM
    cx/cy:    (count, count) penalty matrices (1 - allowed) / denom, SMEM
    out_ref:  (TB, 1)     per-batch loss for this tile
    """
    maskx = mask_ref[0:1, :]                               # (1, P) 0/1
    masky = mask_ref[1:2, :]

    if softmax:
        # Fused channel softmax, computed per-channel so every slab stays 2-D.
        m = x_ref[:, 0, :].astype(jnp.float32)
        for i in range(1, C):
            m = jnp.maximum(m, x_ref[:, i, :].astype(jnp.float32))
        s = jnp.exp(x_ref[:, 0, :].astype(jnp.float32) - m)
        for i in range(1, C):
            s = s + jnp.exp(x_ref[:, i, :].astype(jnp.float32) - m)
        inv_s = pl.reciprocal(s, approx=False)
        chans = [(jnp.exp(x_ref[:, i, :].astype(jnp.float32) - m) * inv_s
                  ).astype(slab_dtype) for i in range(count)]
    else:
        # Strided per-channel reads straight from the VMEM block; only the
        # first `count` channels are ever touched (no sublane slice needed).
        chans = [x_ref[:, i, :].astype(slab_dtype) for i in range(count)]

    acc = None
    for j in range(count):
        # Lane-aligned neighbour slabs: full-width rolls (XLU), wrap lanes
        # (x == W-1, y == H-1) are zeroed by the masks.
        nbx = pltpu.roll(chans[j], shift=P - 1, axis=1) * maskx   # t[., y, x+1]
        nby = pltpu.roll(chans[j], shift=P - W, axis=1) * masky   # t[., y+1, x]

        # Channel mix on the VPU with scalar weights from SMEM.  count ~ 4, so
        # an MXU matmul here would run at <1% utilization.
        ux = chans[0] * cx_ref[0, j]
        uy = chans[0] * cy_ref[0, j]
        for i in range(1, count):
            ux = ux + chans[i] * cx_ref[i, j]
            uy = uy + chans[i] * cy_ref[i, j]

        term = (ux * nbx + uy * nby).astype(jnp.float32)
        acc = term if acc is None else acc + term

    total = jnp.sum(acc, axis=1, keepdims=True)            # (TB, 1) f32
    out_ref[...] = total.astype(out_ref.dtype)             # 1/denom already folded into cx/cy


def _choose_tile_b(B, cap_vmem, cap_steps):
    """Pick (TB, Bpad) with TB | Bpad and TB == Bpad or TB % 8 == 0."""
    # Preferred: multi-step, TB a multiple of 8 dividing B (no copies, >= 2 steps).
    cap = max(1, min(cap_vmem, cap_steps, B))
    tb = (cap // 8) * 8
    while tb >= 8 and B % tb != 0:
        tb -= 8
    if tb >= 8 and tb < B:
        return tb, B
    # Next: single grid step over the whole batch (no copies) if VMEM allows.
    if B <= cap_vmem:
        return B, B
    # Rare fallback: pad the batch (costs one extra copy of t).
    tb = max(8, (max(1, min(cap_vmem, cap_steps)) // 8) * 8)
    return tb, _round_up(B, tb)


def wfc_loss_pallas(t, cx, cy, softmax=False, tile_b=None, compute_dtype=None):
    """Pallas implementation of WFCLoss.forward.

    t:  (B, C, H, W) float (NCHW, same as the PyTorch module); f32 or bf16.
    cx: (count, count) = 1 - wfc_mat_x
    cy: (count, count) = 1 - wfc_mat_y
    compute_dtype: dtype for the in-kernel activation slabs.  Default f32
        (safe on all generations); pass jnp.bfloat16 on v6e/v7x with bf16
        inputs to halve VMEM temporaries (accumulation stays f32).
    returns (B,) float32
    """
    B, C, H, W = t.shape
    count = cx.shape[0]
    assert cx.shape == (count, count) and cy.shape == (count, count)
    assert C >= count

    P = H * W
    x = t.reshape(B, C, P)                                  # metadata-only (contiguous)

    slab_dt = jnp.float32 if compute_dtype is None else jnp.dtype(compute_dtype)
    itemsize = jnp.dtype(x.dtype).itemsize
    slab_isz = jnp.dtype(slab_dt).itemsize

    # Wrap-validity masks for the lane rolls (x == W-1, y == H-1).  Tiny (~2 KB)
    # resident input with a constant index map (fetched once).
    p_idx = np.arange(P)
    masks_np = np.stack([(p_idx % W) != (W - 1), p_idx < (H - 1) * W]).astype(np.float32)
    masks = jnp.asarray(masks_np, dtype=slab_dt)

    denom = float(H * (W - 1) + (H - 1) * W)
    cx32 = jnp.asarray(cx, jnp.float32) * (1.0 / denom)     # fold 1/denom into SMEM weights
    cy32 = jnp.asarray(cy, jnp.float32) * (1.0 / denom)

    # Per-batch-row VMEM footprint: double-buffered input block + live 2-D
    # working slabs (chans + acc + roll/mix temporaries), conservatively f32.
    per_b = 2 * C * P * itemsize + (count + 6) * P * max(slab_isz, 4)
    if softmax:
        per_b += 3 * P * 4
    budget = 20 << 20

    if tile_b is None:
        cap_vmem = max(1, budget // per_b)
        cap_steps = max(8, _round_up(-(-B // 2), 8))        # >= 2 grid steps for large B (v7x: 2 TCs)
        TB, Bpad = _choose_tile_b(B, cap_vmem, cap_steps)
    else:
        TB = int(tile_b)
        assert TB == B or TB % 8 == 0, "tile_b must equal B or be a multiple of 8"
        Bpad = _round_up(B, TB)

    if Bpad != B:                                           # rare fallback only
        x = jnp.pad(x, ((0, Bpad - B), (0, 0), (0, 0)))

    est = TB * per_b + 2 * P * slab_isz + (1 << 20)
    vmem_limit = int(min(48 << 20, max(16 << 20, 2 * est)))

    cost = pl.CostEstimate(
        flops=int(Bpad * P * count * (4 * count + 8)),
        transcendentals=int(Bpad * C * P) if softmax else 0,
        bytes_accessed=int(Bpad * C * P * itemsize + Bpad * 4
                           + 2 * P * slab_isz + 2 * count * count * 4),
    )

    kernel = functools.partial(_wfc_kernel, count=count, C=C, W=W, P=P,
                               softmax=bool(softmax), slab_dtype=slab_dt)
    out = pl.pallas_call(
        kernel,
        out_shape=jax.ShapeDtypeStruct((Bpad, 1), jnp.float32),
        grid=(Bpad // TB,),
        in_specs=[
            pl.BlockSpec((TB, C, P), lambda b: (b, 0, 0)),              # activations
            pl.BlockSpec((2, P), lambda b: (0, 0)),                     # validity masks (resident)
            pl.BlockSpec(memory_space=pltpu.MemorySpace.SMEM),          # cx / denom (scalars)
            pl.BlockSpec(memory_space=pltpu.MemorySpace.SMEM),          # cy / denom (scalars)
        ],
        out_specs=pl.BlockSpec((TB, 1), lambda b: (b, 0)),
        compiler_params=pltpu.CompilerParams(
            dimension_semantics=("parallel",),
            vmem_limit_bytes=vmem_limit),
        cost_estimate=cost,
    )(x, masks, cx32, cy32)
    return out[:B, 0]


if __name__ == "__main__":
    key = jax.random.PRNGKey(0)
    B, C, H, W = 2, 6, 16, 16
    count = 4

    k1, k2, k3 = jax.random.split(key, 3)
    # Deterministic synthetic WFC transition matrices (0/1), as in __init__.
    wfc_mat_x = (jax.random.uniform(k1, (count, count)) > 0.5).astype(jnp.float32)
    wfc_mat_y = (jax.random.uniform(k2, (count, count)) > 0.5).astype(jnp.float32)
    cx = 1.0 - wfc_mat_x     # registered buffer cx
    cy = 1.0 - wfc_mat_y     # registered buffer cy

    t = jax.random.uniform(k3, (B, C, H, W), dtype=jnp.float32)

    # float64 numpy reference (mirrors the PyTorch forward exactly).
    def ref_loss(t_in, use_softmax):
        tn = np.asarray(t_in, dtype=np.float64)
        if use_softmax:
            tn = np.exp(tn - tn.max(axis=1, keepdims=True))
            tn = tn / tn.sum(axis=1, keepdims=True)
        tn = tn[:, :count]
        cxn = np.asarray(cx, dtype=np.float64)
        cyn = np.asarray(cy, dtype=np.float64)
        sx = np.einsum('bihw,ij,bjhw->b', tn[:, :, :, :-1], cxn, tn[:, :, :, 1:])
        sy = np.einsum('bihw,ij,bjhw->b', tn[:, :, :-1, :], cyn, tn[:, :, 1:, :])
        return (sx + sy) / (H * (W - 1) + (H - 1) * W)

    out = jax.block_until_ready(wfc_loss_pallas(t, cx, cy, softmax=False))
    assert out.shape == (B,)
    assert np.allclose(np.asarray(out, dtype=np.float64), ref_loss(t, False),
                       rtol=1e-3, atol=1e-3), (np.asarray(out), ref_loss(t, False))

    out_sm = jax.block_until_ready(wfc_loss_pallas(t, cx, cy, softmax=True))
    assert np.allclose(np.asarray(out_sm, dtype=np.float64), ref_loss(t, True),
                       rtol=1e-3, atol=1e-3), (np.asarray(out_sm), ref_loss(t, True))

    print("KERNEL_OK")
</pallas_src>

<mosaic_0001>
module attributes {stable_mosaic.version = 11 : i64} {
  func.func @_wfc_kernel(%arg0: i32, %arg1: memref<2x6x256xf32, #tpu.memory_space<vmem>>, %arg2: memref<2x256xf32, #tpu.memory_space<vmem>>, %arg3: memref<4x4xf32, #tpu.memory_space<smem>>, %arg4: memref<4x4xf32, #tpu.memory_space<smem>>, %arg5: memref<2x1xf32, #tpu.memory_space<vmem>>) attributes {dimension_semantics = [#tpu.dimension_semantics<parallel>], iteration_bounds = array<i64: 1>, scalar_prefetch = 0 : i64, scratch_operands = 0 : i64, tpu.core_type = #tpu.core_type<tc>, window_params = [{transform_indices = @transform_0, window_bounds = array<i64: 2, 6, 256>}, {pipeline_mode = #tpu.pipeline_mode<synchronous>, transform_indices = @transform_1, window_bounds = array<i64: 2, 256>}, {transform_indices = @transform_2, window_bounds = array<i64: 4, 4>}, {transform_indices = @transform_3, window_bounds = array<i64: 4, 4>}, {transform_indices = @transform_4, window_bounds = array<i64: 2, 1>}]} {
    %c0 = arith.constant 0 : index
    %c0_0 = arith.constant 0 : index
    %0 = vector.load %arg2[%c0, %c0_0] : memref<2x256xf32, #tpu.memory_space<vmem>>, vector<1x256xf32>
    %c1 = arith.constant 1 : index
    %c0_1 = arith.constant 0 : index
    %1 = vector.load %arg2[%c1, %c0_1] : memref<2x256xf32, #tpu.memory_space<vmem>>, vector<1x256xf32>
    %c0_2 = arith.constant 0 : index
    %c0_3 = arith.constant 0 : index
    %c0_4 = arith.constant 0 : index
    %2 = vector.load %arg1[%c0_2, %c0_3, %c0_4] : memref<2x6x256xf32, #tpu.memory_space<vmem>>, vector<2x1x256xf32>
    %3 = vector.shape_cast %2 : vector<2x1x256xf32> to vector<2x256xf32>
    %c0_5 = arith.constant 0 : index
    %c1_6 = arith.constant 1 : index
    %c0_7 = arith.constant 0 : index
    %4 = vector.load %arg1[%c0_5, %c1_6, %c0_7] : memref<2x6x256xf32, #tpu.memory_space<vmem>>, vector<2x1x256xf32>
    %5 = vector.shape_cast %4 : vector<2x1x256xf32> to vector<2x256xf32>
    %c0_8 = arith.constant 0 : index
    %c2 = arith.constant 2 : index
    %c0_9 = arith.constant 0 : index
    %6 = vector.load %arg1[%c0_8, %c2, %c0_9] : memref<2x6x256xf32, #tpu.memory_space<vmem>>, vector<2x1x256xf32>
    %7 = vector.shape_cast %6 : vector<2x1x256xf32> to vector<2x256xf32>
    %c0_10 = arith.constant 0 : index
    %c3 = arith.constant 3 : index
    %c0_11 = arith.constant 0 : index
    %8 = vector.load %arg1[%c0_10, %c3, %c0_11] : memref<2x6x256xf32, #tpu.memory_space<vmem>>, vector<2x1x256xf32>
    %9 = vector.shape_cast %8 : vector<2x1x256xf32> to vector<2x256xf32>
    %c255_i32 = arith.constant 255 : i32
    %10 = tpu.dynamic_rotate %3 by %c255_i32 dim 1 : vector<2x256xf32>, i32 -> vector<2x256xf32>
    %11 = vector.broadcast %0 : vector<1x256xf32> to vector<2x256xf32>
    %12 = arith.mulf %10, %11 : vector<2x256xf32>
    %c240_i32 = arith.constant 240 : i32
    %13 = tpu.dynamic_rotate %3 by %c240_i32 dim 1 : vector<2x256xf32>, i32 -> vector<2x256xf32>
    %14 = vector.broadcast %1 : vector<1x256xf32> to vector<2x256xf32>
    %15 = arith.mulf %13, %14 : vector<2x256xf32>
    %c0_12 = arith.constant 0 : index
    %c0_13 = arith.constant 0 : index
    %16 = memref.load %arg3[%c0_12, %c0_13] : memref<4x4xf32, #tpu.memory_space<smem>>
    %17 = vector.broadcast %16 : f32 to vector<2x256xf32>
    %18 = arith.mulf %3, %17 : vector<2x256xf32>
    %c0_14 = arith.constant 0 : index
    %c0_15 = arith.constant 0 : index
    %19 = memref.load %arg4[%c0_14, %c0_15] : memref<4x4xf32, #tpu.memory_space<smem>>
    %20 = vector.broadcast %19 : f32 to vector<2x256xf32>
    %21 = arith.mulf %3, %20 : vector<2x256xf32>
    %c1_16 = arith.constant 1 : index
    %c0_17 = arith.constant 0 : index
    %22 = memref.load %arg3[%c1_16, %c0_17] : memref<4x4xf32, #tpu.memory_space<smem>>
    %23 = vector.broadcast %22 : f32 to vector<2x256xf32>
    %24 = arith.mulf %5, %23 : vector<2x256xf32>
    %25 = arith.addf %18, %24 : vector<2x256xf32>
    %c1_18 = arith.constant 1 : index
    %c0_19 = arith.constant 0 : index
    %26 = memref.load %arg4[%c1_18, %c0_19] : memref<4x4xf32, #tpu.memory_space<smem>>
    %27 = vector.broadcast %26 : f32 to vector<2x256xf32>
    %28 = arith.mulf %5, %27 : vector<2x256xf32>
    %29 = arith.addf %21, %28 : vector<2x256xf32>
    %c2_20 = arith.constant 2 : index
    %c0_21 = arith.constant 0 : index
    %30 = memref.load %arg3[%c2_20, %c0_21] : memref<4x4xf32, #tpu.memory_space<smem>>
    %31 = vector.broadcast %30 : f32 to vector<2x256xf32>
    %32 = arith.mulf %7, %31 : vector<2x256xf32>
    %33 = arith.addf %25, %32 : vector<2x256xf32>
    %c2_22 = arith.constant 2 : index
    %c0_23 = arith.constant 0 : index
    %34 = memref.load %arg4[%c2_22, %c0_23] : memref<4x4xf32, #tpu.memory_space<smem>>
    %35 = vector.broadcast %34 : f32 to vector<2x256xf32>
    %36 = arith.mulf %7, %35 : vector<2x256xf32>
    %37 = arith.addf %29, %36 : vector<2x256xf32>
    %c3_24 = arith.constant 3 : index
    %c0_25 = arith.constant 0 : index
    %38 = memref.load %arg3[%c3_24, %c0_25] : memref<4x4xf32, #tpu.memory_space<smem>>
    %39 = vector.broadcast %38 : f32 to vector<2x256xf32>
    %40 = arith.mulf %9, %39 : vector<2x256xf32>
    %41 = arith.addf %33, %40 : vector<2x256xf32>
    %c3_26 = arith.constant 3 : index
    %c0_27 = arith.constant 0 : index
    %42 = memref.load %arg4[%c3_26, %c0_27] : memref<4x4xf32, #tpu.memory_space<smem>>
    %43 = vector.broadcast %42 : f32 to vector<2x256xf32>
    %44 = arith.mulf %9, %43 : vector<2x256xf32>
    %45 = arith.addf %37, %44 : vector<2x256xf32>
    %46 = arith.mulf %41, %12 : vector<2x256xf32>
    %47 = arith.mulf %45, %15 : vector<2x256xf32>
    %48 = arith.addf %46, %47 : vector<2x256xf32>
    %c255_i32_28 = arith.constant 255 : i32
    %49 = tpu.dynamic_rotate %5 by %c255_i32_28 dim 1 : vector<2x256xf32>, i32 -> vector<2x256xf32>
    %50 = vector.broadcast %0 : vector<1x256xf32> to vector<2x256xf32>
    %51 = arith.mulf %49, %50 : vector<2x256xf32>
    %c240_i32_29 = arith.constant 240 : i32
    %52 = tpu.dynamic_rotate %5 by %c240_i32_29 dim 1 : vector<2x256xf32>, i32 -> vector<2x256xf32>
    %53 = vector.broadcast %1 : vector<1x256xf32> to vector<2x256xf32>
    %54 = arith.mulf %52, %53 : vector<2x256xf32>
    %c0_30 = arith.constant 0 : index
    %c1_31 = arith.constant 1 : index
    %55 = memref.load %arg3[%c0_30, %c1_31] : memref<4x4xf32, #tpu.memory_space<smem>>
    %56 = vector.broadcast %55 : f32 to vector<2x256xf32>
    %57 = arith.mulf %3, %56 : vector<2x256xf32>
    %c0_32 = arith.constant 0 : index
    %c1_33 = arith.constant 1 : index
    %58 = memref.load %arg4[%c0_32, %c1_33] : memref<4x4xf32, #tpu.memory_space<smem>>
    %59 = vector.broadcast %58 : f32 to vector<2x256xf32>
    %60 = arith.mulf %3, %59 : vector<2x256xf32>
    %c1_34 = arith.constant 1 : index
    %c1_35 = arith.constant 1 : index
    %61 = memref.load %arg3[%c1_34, %c1_35] : memref<4x4xf32, #tpu.memory_space<smem>>
    %62 = vector.broadcast %61 : f32 to vector<2x256xf32>
    %63 = arith.mulf %5, %62 : vector<2x256xf32>
    %64 = arith.addf %57, %63 : vector<2x256xf32>
    %c1_36 = arith.constant 1 : index
    %c1_37 = arith.constant 1 : index
    %65 = memref.load %arg4[%c1_36, %c1_37] : memref<4x4xf32, #tpu.memory_space<smem>>
    %66 = vector.broadcast %65 : f32 to vector<2x256xf32>
    %67 = arith.mulf %5, %66 : vector<2x256xf32>
    %68 = arith.addf %60, %67 : vector<2x256xf32>
    %c2_38 = arith.constant 2 : index
    %c1_39 = arith.constant 1 : index
    %69 = memref.load %arg3[%c2_38, %c1_39] : memref<4x4xf32, #tpu.memory_space<smem>>
    %70 = vector.broadcast %69 : f32 to vector<2x256xf32>
    %71 = arith.mulf %7, %70 : vector<2x256xf32>
    %72 = arith.addf %64, %71 : vector<2x256xf32>
    %c2_40 = arith.constant 2 : index
    %c1_41 = arith.constant 1 : index
    %73 = memref.load %arg4[%c2_40, %c1_41] : memref<4x4xf32, #tpu.memory_space<smem>>
    %74 = vector.broadcast %73 : f32 to vector<2x256xf32>
    %75 = arith.mulf %7, %74 : vector<2x256xf32>
    %76 = arith.addf %68, %75 : vector<2x256xf32>
    %c3_42 = arith.constant 3 : index
    %c1_43 = arith.constant 1 : index
    %77 = memref.load %arg3[%c3_42, %c1_43] : memref<4x4xf32, #tpu.memory_space<smem>>
    %78 = vector.broadcast %77 : f32 to vector<2x256xf32>
    %79 = arith.mulf %9, %78 : vector<2x256xf32>
    %80 = arith.addf %72, %79 : vector<2x256xf32>
    %c3_44 = arith.constant 3 : index
    %c1_45 = arith.constant 1 : index
    %81 = memref.load %arg4[%c3_44, %c1_45] : memref<4x4xf32, #tpu.memory_space<smem>>
    %82 = vector.broadcast %81 : f32 to vector<2x256xf32>
    %83 = arith.mulf %9, %82 : vector<2x256xf32>
    %84 = arith.addf %76, %83 : vector<2x256xf32>
    %85 = arith.mulf %80, %51 : vector<2x256xf32>
    %86 = arith.mulf %84, %54 : vector<2x256xf32>
    %87 = arith.addf %85, %86 : vector<2x256xf32>
    %88 = arith.addf %48, %87 : vector<2x256xf32>
    %c255_i32_46 = arith.constant 255 : i32
    %89 = tpu.dynamic_rotate %7 by %c255_i32_46 dim 1 : vector<2x256xf32>, i32 -> vector<2x256xf32>
    %90 = vector.broadcast %0 : vector<1x256xf32> to vector<2x256xf32>
    %91 = arith.mulf %89, %90 : vector<2x256xf32>
    %c240_i32_47 = arith.constant 240 : i32
    %92 = tpu.dynamic_rotate %7 by %c240_i32_47 dim 1 : vector<2x256xf32>, i32 -> vector<2x256xf32>
    %93 = vector.broadcast %1 : vector<1x256xf32> to vector<2x256xf32>
    %94 = arith.mulf %92, %93 : vector<2x256xf32>
    %c0_48 = arith.constant 0 : index
    %c2_49 = arith.constant 2 : index
    %95 = memref.load %arg3[%c0_48, %c2_49] : memref<4x4xf32, #tpu.memory_space<smem>>
    %96 = vector.broadcast %95 : f32 to vector<2x256xf32>
    %97 = arith.mulf %3, %96 : vector<2x256xf32>
    %c0_50 = arith.constant 0 : index
    %c2_51 = arith.constant 2 : index
    %98 = memref.load %arg4[%c0_50, %c2_51] : memref<4x4xf32, #tpu.memory_space<smem>>
    %99 = vector.broadcast %98 : f32 to vector<2x256xf32>
    %100 = arith.mulf %3, %99 : vector<2x256xf32>
    %c1_52 = arith.constant 1 : index
    %c2_53 = arith.constant 2 : index
    %101 = memref.load %arg3[%c1_52, %c2_53] : memref<4x4xf32, #tpu.memory_space<smem>>
    %102 = vector.broadcast %101 : f32 to vector<2x256xf32>
    %103 = arith.mulf %5, %102 : vector<2x256xf32>
    %104 = arith.addf %97, %103 : vector<2x256xf32>
    %c1_54 = arith.constant 1 : index
    %c2_55 = arith.constant 2 : index
    %105 = memref.load %arg4[%c1_54, %c2_55] : memref<4x4xf32, #tpu.memory_space<smem>>
    %106 = vector.broadcast %105 : f32 to vector<2x256xf32>
    %107 = arith.mulf %5, %106 : vector<2x256xf32>
    %108 = arith.addf %100, %107 : vector<2x256xf32>
    %c2_56 = arith.constant 2 : index
    %c2_57 = arith.constant 2 : index
    %109 = memref.load %arg3[%c2_56, %c2_57] : memref<4x4xf32, #tpu.memory_space<smem>>
    %110 = vector.broadcast %109 : f32 to vector<2x256xf32>
    %111 = arith.mulf %7, %110 : vector<2x256xf32>
    %112 = arith.addf %104, %111 : vector<2x256xf32>
    %c2_58 = arith.constant 2 : index
    %c2_59 = arith.constant 2 : index
    %113 = memref.load %arg4[%c2_58, %c2_59] : memref<4x4xf32, #tpu.memory_space<smem>>
    %114 = vector.broadcast %113 : f32 to vector<2x256xf32>
    %115 = arith.mulf %7, %114 : vector<2x256xf32>
    %116 = arith.addf %108, %115 : vector<2x256xf32>
    %c3_60 = arith.constant 3 : index
    %c2_61 = arith.constant 2 : index
    %117 = memref.load %arg3[%c3_60, %c2_61] : memref<4x4xf32, #tpu.memory_space<smem>>
    %118 = vector.broadcast %117 : f32 to vector<2x256xf32>
    %119 = arith.mulf %9, %118 : vector<2x256xf32>
    %120 = arith.addf %112, %119 : vector<2x256xf32>
    %c3_62 = arith.constant 3 : index
    %c2_63 = arith.constant 2 : index
    %121 = memref.load %arg4[%c3_62, %c2_63] : memref<4x4xf32, #tpu.memory_space<smem>>
    %122 = vector.broadcast %121 : f32 to vector<2x256xf32>
    %123 = arith.mulf %9, %122 : vector<2x256xf32>
    %124 = arith.addf %116, %123 : vector<2x256xf32>
    %125 = arith.mulf %120, %91 : vector<2x256xf32>
    %126 = arith.mulf %124, %94 : vector<2x256xf32>
    %127 = arith.addf %125, %126 : vector<2x256xf32>
    %128 = arith.addf %88, %127 : vector<2x256xf32>
    %c255_i32_64 = arith.constant 255 : i32
    %129 = tpu.dynamic_rotate %9 by %c255_i32_64 dim 1 : vector<2x256xf32>, i32 -> vector<2x256xf32>
    %130 = vector.broadcast %0 : vector<1x256xf32> to vector<2x256xf32>
    %131 = arith.mulf %129, %130 : vector<2x256xf32>
    %c240_i32_65 = arith.constant 240 : i32
    %132 = tpu.dynamic_rotate %9 by %c240_i32_65 dim 1 : vector<2x256xf32>, i32 -> vector<2x256xf32>
    %133 = vector.broadcast %1 : vector<1x256xf32> to vector<2x256xf32>
    %134 = arith.mulf %132, %133 : vector<2x256xf32>
    %c0_66 = arith.constant 0 : index
    %c3_67 = arith.constant 3 : index
    %135 = memref.load %arg3[%c0_66, %c3_67] : memref<4x4xf32, #tpu.memory_space<smem>>
    %136 = vector.broadcast %135 : f32 to vector<2x256xf32>
    %137 = arith.mulf %3, %136 : vector<2x256xf32>
    %c0_68 = arith.constant 0 : index
    %c3_69 = arith.constant 3 : index
    %138 = memref.load %arg4[%c0_68, %c3_69] : memref<4x4xf32, #tpu.memory_space<smem>>
    %139 = vector.broadcast %138 : f32 to vector<2x256xf32>
    %140 = arith.mulf %3, %139 : vector<2x256xf32>
    %c1_70 = arith.constant 1 : index
    %c3_71 = arith.constant 3 : index
    %141 = memref.load %arg3[%c1_70, %c3_71] : memref<4x4xf32, #tpu.memory_space<smem>>
    %142 = vector.broadcast %141 : f32 to vector<2x256xf32>
    %143 = arith.mulf %5, %142 : vector<2x256xf32>
    %144 = arith.addf %137, %143 : vector<2x256xf32>
    %c1_72 = arith.constant 1 : index
    %c3_73 = arith.constant 3 : index
    %145 = memref.load %arg4[%c1_72, %c3_73] : memref<4x4xf32, #tpu.memory_space<smem>>
    %146 = vector.broadcast %145 : f32 to vector<2x256xf32>
    %147 = arith.mulf %5, %146 : vector<2x256xf32>
    %148 = arith.addf %140, %147 : vector<2x256xf32>
    %c2_74 = arith.constant 2 : index
    %c3_75 = arith.constant 3 : index
    %149 = memref.load %arg3[%c2_74, %c3_75] : memref<4x4xf32, #tpu.memory_space<smem>>
    %150 = vector.broadcast %149 : f32 to vector<2x256xf32>
    %151 = arith.mulf %7, %150 : vector<2x256xf32>
    %152 = arith.addf %144, %151 : vector<2x256xf32>
    %c2_76 = arith.constant 2 : index
    %c3_77 = arith.constant 3 : index
    %153 = memref.load %arg4[%c2_76, %c3_77] : memref<4x4xf32, #tpu.memory_space<smem>>
    %154 = vector.broadcast %153 : f32 to vector<2x256xf32>
    %155 = arith.mulf %7, %154 : vector<2x256xf32>
    %156 = arith.addf %148, %155 : vector<2x256xf32>
    %c3_78 = arith.constant 3 : index
    %c3_79 = arith.constant 3 : index
    %157 = memref.load %arg3[%c3_78, %c3_79] : memref<4x4xf32, #tpu.memory_space<smem>>
    %158 = vector.broadcast %157 : f32 to vector<2x256xf32>
    %159 = arith.mulf %9, %158 : vector<2x256xf32>
    %160 = arith.addf %152, %159 : vector<2x256xf32>
    %c3_80 = arith.constant 3 : index
    %c3_81 = arith.constant 3 : index
    %161 = memref.load %arg4[%c3_80, %c3_81] : memref<4x4xf32, #tpu.memory_space<smem>>
    %162 = vector.broadcast %161 : f32 to vector<2x256xf32>
    %163 = arith.mulf %9, %162 : vector<2x256xf32>
    %164 = arith.addf %156, %163 : vector<2x256xf32>
    %165 = arith.mulf %160, %131 : vector<2x256xf32>
    %166 = arith.mulf %164, %134 : vector<2x256xf32>
    %167 = arith.addf %165, %166 : vector<2x256xf32>
    %168 = arith.addf %128, %167 : vector<2x256xf32>
    %cst = arith.constant dense<0.000000e+00> : vector<2xf32>
    %169 = vector.multi_reduction <add>, %168, %cst [1] : vector<2x256xf32> to vector<2xf32>
    %170 = vector.shape_cast %169 : vector<2xf32> to vector<2x1xf32>
    %c0_82 = arith.constant 0 : index
    %c0_83 = arith.constant 0 : index
    %171 = vector.load %arg5[%c0_82, %c0_83] : memref<2x1xf32, #tpu.memory_space<vmem>>, vector<2x1xf32>
    tpu.vector_store %arg5[%c0_82, %c0_83], %170 {strides = array<i32>} : memref<2x1xf32, #tpu.memory_space<vmem>>, vector<2x1xf32>,
    return
  }
  func.func @transform_0(%arg0: i32) -> (i32, i32, i32) {
    %c0_i32 = arith.constant 0 : i32
    %c0_i32_0 = arith.constant 0 : i32
    %c0_i32_1 = arith.constant 0 : i32
    return %arg0, %c0_i32, %c0_i32_0 : i32, i32, i32
  }
  func.func @transform_1(%arg0: i32) -> (i32, i32) {
    %c0_i32 = arith.constant 0 : i32
    %c0_i32_0 = arith.constant 0 : i32
    %c0_i32_1 = arith.constant 0 : i32
    return %c0_i32, %c0_i32_0 : i32, i32
  }
  func.func @transform_2(%arg0: i32) -> (i32, i32) {
    %c0_i32 = arith.constant 0 : i32
    %c0_i32_0 = arith.constant 0 : i32
    %c0_i32_1 = arith.constant 0 : i32
    return %c0_i32, %c0_i32_0 : i32, i32
  }
  func.func @transform_3(%arg0: i32) -> (i32, i32) {
    %c0_i32 = arith.constant 0 : i32
    %c0_i32_0 = arith.constant 0 : i32
    %c0_i32_1 = arith.constant 0 : i32
    return %c0_i32, %c0_i32_0 : i32, i32
  }
  func.func @transform_4(%arg0: i32) -> (i32, i32) {
    %c0_i32 = arith.constant 0 : i32
    %c0_i32_0 = arith.constant 0 : i32
    return %arg0, %c0_i32 : i32, i32
  }
}

</mosaic_0001>

<llo_original>
// kernel: tpu_custom_call.1
$region0: #{tpu_custom_call.1}
  #allocation0 [shape = 'u32[]', space=smem, size = 0x4, offset = 0x4, fixed_abs, tag = 'smem constant byte address 0x4 - core index']
  #allocation1 [shape = 'u32[144,128]{1,0:T(1,128)}', space=vmem, size = 0x12000, scoped, tag = 'internal scratch']
  %s0 = inlined_call_operand.vmem [shape: f32[2,6,256], index: 0, kind: input, shape index: {}]
  %s1 = inlined_call_operand.vmem [shape: f32[2,256], index: 1, kind: input, shape index: {}]
  %s2 = inlined_call_operand.vmem [shape: f32[4,4], index: 2, kind: input, shape index: {}]
  %s3 = inlined_call_operand.vmem [shape: f32[4,4], index: 3, kind: input, shape index: {}]
  %s4 = inlined_call_operand.vmem [shape: f32[2,1], index: 4, kind: output, shape index: {}]
  %s5 = sld [smem:[#allocation0]]
  $region34: #{tpu_custom_call.1} parent=0
    _
  %s7 = ssub.s32 1, %s5
  %s8 = scalar_select 0, %s7, %s5
  $region1: #{tpu_custom_call.1} parent=0
    #allocation2 [shape = 'u8[2048]{0}', space=smem, size = 0x800, scoped, tag = 'input window, operand 2, single buffered']
    #allocation3 [shape = 's32[1]{0}', space=sflag, size = 0x4, scoped, tag = 'scoped memory for tpu_custom_call.1']
    #allocation4 [shape = 'u8[2048]{0}', space=smem, size = 0x800, scoped, tag = 'input window, operand 3, single buffered']
    #allocation5 [shape = 's32[1]{0}', space=sflag, size = 0x4, scoped, tag = 'scoped memory for tpu_custom_call.1']
    %9 = vsyncpa [#allocation3], 0
    %10 = vsyncpa [#allocation5], 0
    // Predicated region
    $region2: #{tpu_custom_call.1} parent=1 // pred_check
      _
    $region3: #{tpu_custom_call.1} parent=1 // pred_check_branch
      %12 = sbr.rel (0) target = $region5
    $region4: #{tpu_custom_call.1} parent=1 // pred_region
      _
    $region5: #{tpu_custom_call.1} parent=1 // pred_fallthru
      _
    // Predicated region
    $region6: #{tpu_custom_call.1} parent=1 // pred_check
      _
    $region7: #{tpu_custom_call.1} parent=1 // pred_check_branch
      %14 = sbr.rel (0) target = $region9
    $region8: #{tpu_custom_call.1} parent=1 // pred_region
      _
    $region9: #{tpu_custom_call.1} parent=1 // pred_fallthru
      _
    // Predicated region
    $region10: #{tpu_custom_call.1} parent=1 // pred_check
      _
    $region11: #{tpu_custom_call.1} parent=1 // pred_check_branch
      %16 = sbr.rel (0) target = $region13
    $region12: #{tpu_custom_call.1} parent=1 // pred_region
      %s18 = ssub.s32 64, 64
      %19 = vsyncadd [#allocation3], %s18
      %s21 = sshll.u32 %s2, 4
      %s22 = int_to_ptr.vmem [resolvable:$true] %s21
      %24 = dma.vmem_to_smem %s22, 64, [#allocation2], [#allocation3]
    $region13: #{tpu_custom_call.1} parent=1 // pred_fallthru
      _
    // Predicated region
    $region14: #{tpu_custom_call.1} parent=1 // pred_check
      _
    $region15: #{tpu_custom_call.1} parent=1 // pred_check_branch
      %26 = sbr.rel (0) target = $region17
    $region16: #{tpu_custom_call.1} parent=1 // pred_region
      %s28 = ssub.s32 64, 64
      %29 = vsyncadd [#allocation5], %s28
      %s31 = sshll.u32 %s3, 4
      %s32 = int_to_ptr.vmem [resolvable:$true] %s31
      %34 = dma.vmem_to_smem %s32, 64, [#allocation4], [#allocation5]
    $region17: #{tpu_custom_call.1} parent=1 // pred_fallthru
      _
    // Predicated region
    $region18: #{tpu_custom_call.1} parent=1 // pred_check
      _
    $region19: #{tpu_custom_call.1} parent=1 // pred_check_branch
      %36 = sbr.rel (0) target = $region21
    $region20: #{tpu_custom_call.1} parent=1 // pred_region
      %37 = dma.done [#allocation3], 64
    $region21: #{tpu_custom_call.1} parent=1 // pred_fallthru
      _
    // Predicated region
    $region22: #{tpu_custom_call.1} parent=1 // pred_check
      _
    $region23: #{tpu_custom_call.1} parent=1 // pred_check_branch
      %39 = sbr.rel (0) target = $region25
    $region24: #{tpu_custom_call.1} parent=1 // pred_region
      %40 = dma.done [#allocation5], 64
    $region25: #{tpu_custom_call.1} parent=1 // pred_fallthru
      _
    %41 = sfence
    %v42 = vld [vmem:[%s1] ss:$2 sm:$0x3]
    %s43 = scalar_lea.vmem %s1, 1
    %v44 = vld [vmem:[%s43] ss:$2 sm:$0x3]
    %v45 = vld [vmem:[%s0] ss:$8 sm:$0x3]
    %s46 = scalar_lea.vmem %s0, 16
    %v47 = vld [vmem:[%s46] ss:$8 sm:$0x3]
    %s48 = scalar_lea.vmem %s0, 1
    %v49 = vld [vmem:[%s48] ss:$8 sm:$0x3]
    %s50 = scalar_lea.vmem %s0, 17
    %v51 = vld [vmem:[%s50] ss:$8 sm:$0x3]
    %s52 = scalar_lea.vmem %s0, 2
    %v53 = vld [vmem:[%s52] ss:$8 sm:$0x3]
    %s54 = scalar_lea.vmem %s0, 18
    %v55 = vld [vmem:[%s54] ss:$8 sm:$0x3]
    %s56 = scalar_lea.vmem %s0, 3
    %v57 = vld [vmem:[%s56] ss:$8 sm:$0x3]
    %s58 = scalar_lea.vmem %s0, 19
    %v59 = vld [vmem:[%s58] ss:$8 sm:$0x3]
    %v62 = vcombine.low %v45, %v47
    %v64 = vunpack.c.l.s4 1966171168
    %v65 = vunpack.c.0.s8 %v64
    %v66 = vlaneseq
    %v67 = vshrl.u32 %v66, 7
    %v68 = vsub.s32 %v65, %v67
    %v69 = vrot.slane %v62, %v68
    %v70 = vcombine.high %v69, %v69
    %v72 = vunpack.c.l.s4 1966171168
    %v73 = vunpack.c.0.s8 %v72
    %v74 = vlaneseq
    %v75 = vshrl.u32 %v74, 7
    %v76 = vsub.s32 %v73, %v75
    %v77 = vrot.slane %v69, %v76
    %v79 = vunpack.c.l.s4 1966171168
    %v80 = vunpack.c.0.s8 %v79
    %v81 = vlaneseq
    %v82 = vshrl.u32 %v81, 7
    %v83 = vsub.s32 %v80, %v82
    %v84 = vrot.slane %v70, %v83
    %87 = vrot.lane.b32.xlu0 %v77, 127
    %v88 = vpop.permute.xlu0 %87
    %89 = vrot.lane.b32.xlu0 %v84, 127
    %v90 = vpop.permute.xlu0 %89
    %v91 = vlaneseq
    %v92 = vand.u32 %v91, 127
    %vm93 = vcmp.lt.s32.totalorder %v92, 127
    %v94 = vsel %vm93, %v88, %v90
    %v95 = vsel %vm93, %v90, %v88
    %v97 = vlaneseq
    %v98 = vshrl.u32 %v97, 7
    %v99 = vsub.s32 0, %v98
    %v100 = vrot.slane %v42, %v99
    %v101 = vlaneseq
    %v102 = vshrl.u32 %v101, 7
    %v103 = vsub.s32 1, %v102
    %v104 = vrot.slane %v42, %v103
    %v107 = vmul.f32 %v94, %v100
    %v108 = vmul.f32 %v95, %v104
    %109 = vrot.lane.b32.xlu0 %v77, 112
    %v110 = vpop.permute.xlu0 %109
    %111 = vrot.lane.b32.xlu0 %v84, 112
    %v112 = vpop.permute.xlu0 %111
    %vm113 = vcmp.lt.s32.totalorder %v92, 112
    %v114 = vsel %vm113, %v110, %v112
    %v115 = vsel %vm113, %v112, %v110
    %v117 = vlaneseq
    %v118 = vshrl.u32 %v117, 7
    %v119 = vsub.s32 0, %v118
    %v120 = vrot.slane %v44, %v119
    %v121 = vlaneseq
    %v122 = vshrl.u32 %v121, 7
    %v123 = vsub.s32 1, %v122
    %v124 = vrot.slane %v44, %v123
    %v127 = vmul.f32 %v114, %v120
    %v128 = vmul.f32 %v115, %v124
    %s129 = sld [smem:[#allocation2]]
    %v130 = vstv %s129
    %v131 = vmul.f32 %v45, %v130
    %v132 = vmul.f32 %v47, %v130
    %s133 = sld [smem:[#allocation4]]
    %v134 = vstv %s133
    %v135 = vmul.f32 %v45, %v134
    %v136 = vmul.f32 %v47, %v134
    %s137 = sld [smem:[#allocation2 + $0x80]]
    %v138 = vstv %s137
    %v139 = vmul.f32 %v49, %v138
    %v140 = vmul.f32 %v51, %v138
    %v141 = vadd.f32 %v131, %v139
    %v142 = vadd.f32 %v132, %v140
    %s143 = sld [smem:[#allocation4 + $0x80]]
    %v144 = vstv %s143
    %v145 = vmul.f32 %v49, %v144
    %v146 = vmul.f32 %v51, %v144
    %v147 = vadd.f32 %v135, %v145
    %v148 = vadd.f32 %v136, %v146
    %s149 = sld [smem:[#allocation2 + $0x100]]
    %v150 = vstv %s149
    %v151 = vmul.f32 %v53, %v150
    %v152 = vmul.f32 %v55, %v150
    %v153 = vadd.f32 %v141, %v151
    %v154 = vadd.f32 %v142, %v152
    %s155 = sld [smem:[#allocation4 + $0x100]]
    %v156 = vstv %s155
    %v157 = vmul.f32 %v53, %v156
    %v158 = vmul.f32 %v55, %v156
    %v159 = vadd.f32 %v147, %v157
    %v160 = vadd.f32 %v148, %v158
    %s161 = sld [smem:[#allocation2 + $0x180]]
    %v162 = vstv %s161
    %v163 = vmul.f32 %v57, %v162
    %v164 = vmul.f32 %v59, %v162
    %v165 = vadd.f32 %v153, %v163
    %v166 = vadd.f32 %v154, %v164
    %s167 = sld [smem:[#allocation4 + $0x180]]
    %v168 = vstv %s167
    %v169 = vmul.f32 %v57, %v168
    %v170 = vmul.f32 %v59, %v168
    %v171 = vadd.f32 %v159, %v169
    %v172 = vadd.f32 %v160, %v170
    %v175 = vcombine.low %v107, %v108
    %v177 = vunpack.c.l.s4 1966171168
    %v178 = vunpack.c.0.s8 %v177
    %v179 = vlaneseq
    %v180 = vshrl.u32 %v179, 7
    %v181 = vsub.s32 %v178, %v180
    %v182 = vrot.slane %v175, %v181
    %v183 = vcombine.high %v182, %v182
    %v185 = vunpack.c.l.s4 1966171168
    %v186 = vunpack.c.0.s8 %v185
    %v187 = vlaneseq
    %v188 = vshrl.u32 %v187, 7
    %v189 = vsub.s32 %v186, %v188
    %v190 = vrot.slane %v182, %v189
    %v192 = vunpack.c.l.s4 1966171168
    %v193 = vunpack.c.0.s8 %v192
    %v194 = vlaneseq
    %v195 = vshrl.u32 %v194, 7
    %v196 = vsub.s32 %v193, %v195
    %v197 = vrot.slane %v183, %v196
    %v200 = vmul.f32 %v165, %v190
    %v201 = vmul.f32 %v166, %v197
    %v204 = vcombine.low %v127, %v128
    %v206 = vunpack.c.l.s4 1966171168
    %v207 = vunpack.c.0.s8 %v206
    %v208 = vlaneseq
    %v209 = vshrl.u32 %v208, 7
    %v210 = vsub.s32 %v207, %v209
    %v211 = vrot.slane %v204, %v210
    %v212 = vcombine.high %v211, %v211
    %v214 = vunpack.c.l.s4 1966171168
    %v215 = vunpack.c.0.s8 %v214
    %v216 = vlaneseq
    %v217 = vshrl.u32 %v216, 7
    %v218 = vsub.s32 %v215, %v217
    %v219 = vrot.slane %v211, %v218
    %v221 = vunpack.c.l.s4 1966171168
    %v222 = vunpack.c.0.s8 %v221
    %v223 = vlaneseq
    %v224 = vshrl.u32 %v223, 7
    %v225 = vsub.s32 %v222, %v224
    %v226 = vrot.slane %v212, %v225
    %v229 = vmul.f32 %v171, %v219
    %v230 = vmul.f32 %v172, %v226
    %v231 = vadd.f32 %v200, %v229
    %v232 = vadd.f32 %v201, %v230
    %v235 = vcombine.low %v49, %v51
    %v237 = vunpack.c.l.s4 1966171168
    %v238 = vunpack.c.0.s8 %v237
    %v239 = vlaneseq
    %v240 = vshrl.u32 %v239, 7
    %v241 = vsub.s32 %v238, %v240
    %v242 = vrot.slane %v235, %v241
    %v243 = vcombine.high %v242, %v242
    %v245 = vunpack.c.l.s4 1966171168
    %v246 = vunpack.c.0.s8 %v245
    %v247 = vlaneseq
    %v248 = vshrl.u32 %v247, 7
    %v249 = vsub.s32 %v246, %v248
    %v250 = vrot.slane %v242, %v249
    %v252 = vunpack.c.l.s4 1966171168
    %v253 = vunpack.c.0.s8 %v252
    %v254 = vlaneseq
    %v255 = vshrl.u32 %v254, 7
    %v256 = vsub.s32 %v253, %v255
    %v257 = vrot.slane %v243, %v256
    %260 = vrot.lane.b32.xlu0 %v250, 127
    %v261 = vpop.permute.xlu0 %260
    %262 = vrot.lane.b32.xlu0 %v257, 127
    %v263 = vpop.permute.xlu0 %262
    %v264 = vsel %vm93, %v261, %v263
    %v265 = vsel %vm93, %v263, %v261
    %v266 = vmul.f32 %v264, %v100
    %v267 = vmul.f32 %v265, %v104
    %268 = vrot.lane.b32.xlu0 %v250, 112
    %v269 = vpop.permute.xlu0 %268
    %270 = vrot.lane.b32.xlu0 %v257, 112
    %v271 = vpop.permute.xlu0 %270
    %v272 = vsel %vm113, %v269, %v271
    %v273 = vsel %vm113, %v271, %v269
    %v274 = vmul.f32 %v272, %v120
    %v275 = vmul.f32 %v273, %v124
    %s276 = sld [smem:[#allocation2 + $0x1]]
    %v277 = vstv %s276
    %v278 = vmul.f32 %v45, %v277
    %v279 = vmul.f32 %v47, %v277
    %s280 = sld [smem:[#allocation4 + $0x1]]
    %v281 = vstv %s280
    %v282 = vmul.f32 %v45, %v281
    %v283 = vmul.f32 %v47, %v281
    %s284 = sld [smem:[#allocation2 + $0x81]]
    %v285 = vstv %s284
    %v286 = vmul.f32 %v49, %v285
    %v287 = vmul.f32 %v51, %v285
    %v288 = vadd.f32 %v278, %v286
    %v289 = vadd.f32 %v279, %v287
    %s290 = sld [smem:[#allocation4 + $0x81]]
    %v291 = vstv %s290
    %v292 = vmul.f32 %v49, %v291
    %v293 = vmul.f32 %v51, %v291
    %v294 = vadd.f32 %v282, %v292
    %v295 = vadd.f32 %v283, %v293
    %s296 = sld [smem:[#allocation2 + $0x101]]
    %v297 = vstv %s296
    %v298 = vmul.f32 %v53, %v297
    %v299 = vmul.f32 %v55, %v297
    %v300 = vadd.f32 %v288, %v298
    %v301 = vadd.f32 %v289, %v299
    %s302 = sld [smem:[#allocation4 + $0x101]]
    %v303 = vstv %s302
    %v304 = vmul.f32 %v53, %v303
    %v305 = vmul.f32 %v55, %v303
    %v306 = vadd.f32 %v294, %v304
    %v307 = vadd.f32 %v295, %v305
    %s308 = sld [smem:[#allocation2 + $0x181]]
    %v309 = vstv %s308
    %v310 = vmul.f32 %v57, %v309
    %v311 = vmul.f32 %v59, %v309
    %v312 = vadd.f32 %v300, %v310
    %v313 = vadd.f32 %v301, %v311
    %s314 = sld [smem:[#allocation4 + $0x181]]
    %v315 = vstv %s314
    %v316 = vmul.f32 %v57, %v315
    %v317 = vmul.f32 %v59, %v315
    %v318 = vadd.f32 %v306, %v316
    %v319 = vadd.f32 %v307, %v317
    %v322 = vcombine.low %v266, %v267
    %v324 = vunpack.c.l.s4 1966171168
    %v325 = vunpack.c.0.s8 %v324
    %v326 = vlaneseq
    %v327 = vshrl.u32 %v326, 7
    %v328 = vsub.s32 %v325, %v327
    %v329 = vrot.slane %v322, %v328
    %v330 = vcombine.high %v329, %v329
    %v332 = vunpack.c.l.s4 1966171168
    %v333 = vunpack.c.0.s8 %v332
    %v334 = vlaneseq
    %v335 = vshrl.u32 %v334, 7
    %v336 = vsub.s32 %v333, %v335
    %v337 = vrot.slane %v329, %v336
    %v339 = vunpack.c.l.s4 1966171168
    %v340 = vunpack.c.0.s8 %v339
    %v341 = vlaneseq
    %v342 = vshrl.u32 %v341, 7
    %v343 = vsub.s32 %v340, %v342
    %v344 = vrot.slane %v330, %v343
    %v347 = vmul.f32 %v312, %v337
    %v348 = vmul.f32 %v313, %v344
    %v351 = vcombine.low %v274, %v275
    %v353 = vunpack.c.l.s4 1966171168
    %v354 = vunpack.c.0.s8 %v353
    %v355 = vlaneseq
    %v356 = vshrl.u32 %v355, 7
    %v357 = vsub.s32 %v354, %v356
    %v358 = vrot.slane %v351, %v357
    %v359 = vcombine.high %v358, %v358
    %v361 = vunpack.c.l.s4 1966171168
    %v362 = vunpack.c.0.s8 %v361
    %v363 = vlaneseq
    %v364 = vshrl.u32 %v363, 7
    %v365 = vsub.s32 %v362, %v364
    %v366 = vrot.slane %v358, %v365
    %v368 = vunpack.c.l.s4 1966171168
    %v369 = vunpack.c.0.s8 %v368
    %v370 = vlaneseq
    %v371 = vshrl.u32 %v370, 7
    %v372 = vsub.s32 %v369, %v371
    %v373 = vrot.slane %v359, %v372
    %v376 = vmul.f32 %v318, %v366
    %v377 = vmul.f32 %v319, %v373
    %v378 = vadd.f32 %v347, %v376
    %v379 = vadd.f32 %v348, %v377
    %v380 = vadd.f32 %v231, %v378
    %v381 = vadd.f32 %v232, %v379
    %v384 = vcombine.low %v53, %v55
    %v386 = vunpack.c.l.s4 1966171168
    %v387 = vunpack.c.0.s8 %v386
    %v388 = vlaneseq
    %v389 = vshrl.u32 %v388, 7
    %v390 = vsub.s32 %v387, %v389
    %v391 = vrot.slane %v384, %v390
    %v392 = vcombine.high %v391, %v391
    %v394 = vunpack.c.l.s4 1966171168
    %v395 = vunpack.c.0.s8 %v394
    %v396 = vlaneseq
    %v397 = vshrl.u32 %v396, 7
    %v398 = vsub.s32 %v395, %v397
    %v399 = vrot.slane %v391, %v398
    %v401 = vunpack.c.l.s4 1966171168
    %v402 = vunpack.c.0.s8 %v401
    %v403 = vlaneseq
    %v404 = vshrl.u32 %v403, 7
    %v405 = vsub.s32 %v402, %v404
    %v406 = vrot.slane %v392, %v405
    %409 = vrot.lane.b32.xlu0 %v399, 127
    %v410 = vpop.permute.xlu0 %409
    %411 = vrot.lane.b32.xlu0 %v406, 127
    %v412 = vpop.permute.xlu0 %411
    %v413 = vsel %vm93, %v410, %v412
    %v414 = vsel %vm93, %v412, %v410
    %v415 = vmul.f32 %v413, %v100
    %v416 = vmul.f32 %v414, %v104
    %417 = vrot.lane.b32.xlu0 %v399, 112
    %v418 = vpop.permute.xlu0 %417
    %419 = vrot.lane.b32.xlu0 %v406, 112
    %v420 = vpop.permute.xlu0 %419
    %v421 = vsel %vm113, %v418, %v420
    %v422 = vsel %vm113, %v420, %v418
    %v423 = vmul.f32 %v421, %v120
    %v424 = vmul.f32 %v422, %v124
    %s425 = sld [smem:[#allocation2 + $0x2]]
    %v426 = vstv %s425
    %v427 = vmul.f32 %v45, %v426
    %v428 = vmul.f32 %v47, %v426
    %s429 = sld [smem:[#allocation4 + $0x2]]
    %v430 = vstv %s429
    %v431 = vmul.f32 %v45, %v430
    %v432 = vmul.f32 %v47, %v430
    %s433 = sld [smem:[#allocation2 + $0x82]]
    %v434 = vstv %s433
    %v435 = vmul.f32 %v49, %v434
    %v436 = vmul.f32 %v51, %v434
    %v437 = vadd.f32 %v427, %v435
    %v438 = vadd.f32 %v428, %v436
    %s439 = sld [smem:[#allocation4 + $0x82]]
    %v440 = vstv %s439
    %v441 = vmul.f32 %v49, %v440
    %v442 = vmul.f32 %v51, %v440
    %v443 = vadd.f32 %v431, %v441
    %v444 = vadd.f32 %v432, %v442
    %s445 = sld [smem:[#allocation2 + $0x102]]
    %v446 = vstv %s445
    %v447 = vmul.f32 %v53, %v446
    %v448 = vmul.f32 %v55, %v446
    %v449 = vadd.f32 %v437, %v447
    %v450 = vadd.f32 %v438, %v448
    %s451 = sld [smem:[#allocation4 + $0x102]]
    %v452 = vstv %s451
    %v453 = vmul.f32 %v53, %v452
    %v454 = vmul.f32 %v55, %v452
    %v455 = vadd.f32 %v443, %v453
    %v456 = vadd.f32 %v444, %v454
    %s457 = sld [smem:[#allocation2 + $0x182]]
    %v458 = vstv %s457
    %v459 = vmul.f32 %v57, %v458
    %v460 = vmul.f32 %v59, %v458
    %v461 = vadd.f32 %v449, %v459
    %v462 = vadd.f32 %v450, %v460
    %s463 = sld [smem:[#allocation4 + $0x182]]
    %v464 = vstv %s463
    %v465 = vmul.f32 %v57, %v464
    %v466 = vmul.f32 %v59, %v464
    %v467 = vadd.f32 %v455, %v465
    %v468 = vadd.f32 %v456, %v466
    %v471 = vcombine.low %v415, %v416
    %v473 = vunpack.c.l.s4 1966171168
    %v474 = vunpack.c.0.s8 %v473
    %v475 = vlaneseq
    %v476 = vshrl.u32 %v475, 7
    %v477 = vsub.s32 %v474, %v476
    %v478 = vrot.slane %v471, %v477
    %v479 = vcombine.high %v478, %v478
    %v481 = vunpack.c.l.s4 1966171168
    %v482 = vunpack.c.0.s8 %v481
    %v483 = vlaneseq
    %v484 = vshrl.u32 %v483, 7
    %v485 = vsub.s32 %v482, %v484
    %v486 = vrot.slane %v478, %v485
    %v488 = vunpack.c.l.s4 1966171168
    %v489 = vunpack.c.0.s8 %v488
    %v490 = vlaneseq
    %v491 = vshrl.u32 %v490, 7
    %v492 = vsub.s32 %v489, %v491
    %v493 = vrot.slane %v479, %v492
    %v496 = vmul.f32 %v461, %v486
    %v497 = vmul.f32 %v462, %v493
    %v500 = vcombine.low %v423, %v424
    %v502 = vunpack.c.l.s4 1966171168
    %v503 = vunpack.c.0.s8 %v502
    %v504 = vlaneseq
    %v505 = vshrl.u32 %v504, 7
    %v506 = vsub.s32 %v503, %v505
    %v507 = vrot.slane %v500, %v506
    %v508 = vcombine.high %v507, %v507
    %v510 = vunpack.c.l.s4 1966171168
    %v511 = vunpack.c.0.s8 %v510
    %v512 = vlaneseq
    %v513 = vshrl.u32 %v512, 7
    %v514 = vsub.s32 %v511, %v513
    %v515 = vrot.slane %v507, %v514
    %v517 = vunpack.c.l.s4 1966171168
    %v518 = vunpack.c.0.s8 %v517
    %v519 = vlaneseq
    %v520 = vshrl.u32 %v519, 7
    %v521 = vsub.s32 %v518, %v520
    %v522 = vrot.slane %v508, %v521
    %v525 = vmul.f32 %v467, %v515
    %v526 = vmul.f32 %v468, %v522
    %v527 = vadd.f32 %v496, %v525
    %v528 = vadd.f32 %v497, %v526
    %v529 = vadd.f32 %v380, %v527
    %v530 = vadd.f32 %v381, %v528
    %v533 = vcombine.low %v57, %v59
    %v535 = vunpack.c.l.s4 1966171168
    %v536 = vunpack.c.0.s8 %v535
    %v537 = vlaneseq
    %v538 = vshrl.u32 %v537, 7
    %v539 = vsub.s32 %v536, %v538
    %v540 = vrot.slane %v533, %v539
    %v541 = vcombine.high %v540, %v540
    %v543 = vunpack.c.l.s4 1966171168
    %v544 = vunpack.c.0.s8 %v543
    %v545 = vlaneseq
    %v546 = vshrl.u32 %v545, 7
    %v547 = vsub.s32 %v544, %v546
    %v548 = vrot.slane %v540, %v547
    %v550 = vunpack.c.l.s4 1966171168
    %v551 = vunpack.c.0.s8 %v550
    %v552 = vlaneseq
    %v553 = vshrl.u32 %v552, 7
    %v554 = vsub.s32 %v551, %v553
    %v555 = vrot.slane %v541, %v554
    %558 = vrot.lane.b32.xlu0 %v548, 127
    %v559 = vpop.permute.xlu0 %558
    %560 = vrot.lane.b32.xlu0 %v555, 127
    %v561 = vpop.permute.xlu0 %560
    %v562 = vsel %vm93, %v559, %v561
    %v563 = vsel %vm93, %v561, %v559
    %v564 = vmul.f32 %v562, %v100
    %v565 = vmul.f32 %v563, %v104
    %566 = vrot.lane.b32.xlu0 %v548, 112
    %v567 = vpop.permute.xlu0 %566
    %568 = vrot.lane.b32.xlu0 %v555, 112
    %v569 = vpop.permute.xlu0 %568
    %v570 = vsel %vm113, %v567, %v569
    %v571 = vsel %vm113, %v569, %v567
    %v572 = vmul.f32 %v570, %v120
    %v573 = vmul.f32 %v571, %v124
    %s574 = sld [smem:[#allocation2 + $0x3]]
    %v575 = vstv %s574
    %v576 = vmul.f32 %v45, %v575
    %v577 = vmul.f32 %v47, %v575
    %s578 = sld [smem:[#allocation4 + $0x3]]
    %v579 = vstv %s578
    %v580 = vmul.f32 %v45, %v579
    %v581 = vmul.f32 %v47, %v579
    %s582 = sld [smem:[#allocation2 + $0x83]]
    %v583 = vstv %s582
    %v584 = vmul.f32 %v49, %v583
    %v585 = vmul.f32 %v51, %v583
    %v586 = vadd.f32 %v576, %v584
    %v587 = vadd.f32 %v577, %v585
    %s588 = sld [smem:[#allocation4 + $0x83]]
    %v589 = vstv %s588
    %v590 = vmul.f32 %v49, %v589
    %v591 = vmul.f32 %v51, %v589
    %v592 = vadd.f32 %v580, %v590
    %v593 = vadd.f32 %v581, %v591
    %s594 = sld [smem:[#allocation2 + $0x103]]
    %v595 = vstv %s594
    %v596 = vmul.f32 %v53, %v595
    %v597 = vmul.f32 %v55, %v595
    %v598 = vadd.f32 %v586, %v596
    %v599 = vadd.f32 %v587, %v597
    %s600 = sld [smem:[#allocation4 + $0x103]]
    %v601 = vstv %s600
    %v602 = vmul.f32 %v53, %v601
    %v603 = vmul.f32 %v55, %v601
    %v604 = vadd.f32 %v592, %v602
    %v605 = vadd.f32 %v593, %v603
    %s606 = sld [smem:[#allocation2 + $0x183]]
    %v607 = vstv %s606
    %v608 = vmul.f32 %v57, %v607
    %v609 = vmul.f32 %v59, %v607
    %v610 = vadd.f32 %v598, %v608
    %v611 = vadd.f32 %v599, %v609
    %s612 = sld [smem:[#allocation4 + $0x183]]
    %v613 = vstv %s612
    %v614 = vmul.f32 %v57, %v613
    %v615 = vmul.f32 %v59, %v613
    %v616 = vadd.f32 %v604, %v614
    %v617 = vadd.f32 %v605, %v615
    %v620 = vcombine.low %v564, %v565
    %v622 = vunpack.c.l.s4 1966171168
    %v623 = vunpack.c.0.s8 %v622
    %v624 = vlaneseq
    %v625 = vshrl.u32 %v624, 7
    %v626 = vsub.s32 %v623, %v625
    %v627 = vrot.slane %v620, %v626
    %v628 = vcombine.high %v627, %v627
    %v630 = vunpack.c.l.s4 1966171168
    %v631 = vunpack.c.0.s8 %v630
    %v632 = vlaneseq
    %v633 = vshrl.u32 %v632, 7
    %v634 = vsub.s32 %v631, %v633
    %v635 = vrot.slane %v627, %v634
    %v637 = vunpack.c.l.s4 1966171168
    %v638 = vunpack.c.0.s8 %v637
    %v639 = vlaneseq
    %v640 = vshrl.u32 %v639, 7
    %v641 = vsub.s32 %v638, %v640
    %v642 = vrot.slane %v628, %v641
    %v645 = vmul.f32 %v610, %v635
    %v646 = vmul.f32 %v611, %v642
    %v649 = vcombine.low %v572, %v573
    %v651 = vunpack.c.l.s4 1966171168
    %v652 = vunpack.c.0.s8 %v651
    %v653 = vlaneseq
    %v654 = vshrl.u32 %v653, 7
    %v655 = vsub.s32 %v652, %v654
    %v656 = vrot.slane %v649, %v655
    %v657 = vcombine.high %v656, %v656
    %v659 = vunpack.c.l.s4 1966171168
    %v660 = vunpack.c.0.s8 %v659
    %v661 = vlaneseq
    %v662 = vshrl.u32 %v661, 7
    %v663 = vsub.s32 %v660, %v662
    %v664 = vrot.slane %v656, %v663
    %v666 = vunpack.c.l.s4 1966171168
    %v667 = vunpack.c.0.s8 %v666
    %v668 = vlaneseq
    %v669 = vshrl.u32 %v668, 7
    %v670 = vsub.s32 %v667, %v669
    %v671 = vrot.slane %v657, %v670
    %v674 = vmul.f32 %v616, %v664
    %v675 = vmul.f32 %v617, %v671
    %v676 = vadd.f32 %v645, %v674
    %v677 = vadd.f32 %v646, %v675
    %v678 = vadd.f32 %v529, %v676
    %v679 = vadd.f32 %v530, %v677
    %v682 = vcombine.low %v678, %v679
    %v684 = vunpack.c.l.s4 1966171168
    %v685 = vunpack.c.0.s8 %v684
    %v686 = vlaneseq
    %v687 = vshrl.u32 %v686, 7
    %v688 = vsub.s32 %v685, %v687
    %v689 = vrot.slane %v682, %v688
    %v690 = vcombine.high %v689, %v689
    %v692 = vunpack.c.l.s4 1966171168
    %v693 = vunpack.c.0.s8 %v692
    %v694 = vlaneseq
    %v695 = vshrl.u32 %v694, 7
    %v696 = vsub.s32 %v693, %v695
    %v697 = vrot.slane %v689, %v696
    %v699 = vunpack.c.l.s4 1966171168
    %v700 = vunpack.c.0.s8 %v699
    %v701 = vlaneseq
    %v702 = vshrl.u32 %v701, 7
    %v703 = vsub.s32 %v700, %v702
    %v704 = vrot.slane %v690, %v703
    %vm707 = vcmask 1041408
    %v708 = vsel %vm707, %v697, 0.0
    %v709 = vsel %vm707, %v704, 0.0
    %v710 = vadd.f32 %v708, %v709
    %711 = vadd.xlane.f32.xlu0 %v710
    %v712 = vpop.xlane.xlu0 %711
    %vm713 = vcmask 1024
    %714 = vst.msk [vmem:[%s4] sm:$0x3] %vm713, %v712
    // Predicated region
    $region26: #{tpu_custom_call.1} parent=1 // pred_check
      _
    $region27: #{tpu_custom_call.1} parent=1 // pred_check_branch
      %716 = sbr.rel (0) target = $region29
    $region28: #{tpu_custom_call.1} parent=1 // pred_region
      _
    $region29: #{tpu_custom_call.1} parent=1 // pred_fallthru
      _
    // Predicated region
    $region30: #{tpu_custom_call.1} parent=1 // pred_check
      _
    $region31: #{tpu_custom_call.1} parent=1 // pred_check_branch
      %718 = sbr.rel (0) target = $region33
    $region32: #{tpu_custom_call.1} parent=1 // pred_region
      _
    $region33: #{tpu_custom_call.1} parent=1 // pred_fallthru
      _
    %719 = vsyncpa [#allocation3], 1
    %720 = vsyncpa [#allocation5], 1

</llo_original>
